<compile_context>
chip_gen: v7x
topology: tpu7x:2x2x1
jax: 0.10.0
libtpu: 0.0.40
codegen_flags: <defaults>
</compile_context>

<pallas_src>
import jax
import jax.numpy as jnp
from jax.experimental import pallas as pl
from jax.experimental.pallas import tpu as pltpu


# ---------------------------------------------------------------------------
# rotation utilities (tiny, plain JAX glue — mirror pytorch3d semantics)
# ---------------------------------------------------------------------------
def rotation_6d_to_matrix(d6):
    a1 = d6[..., :3]
    a2 = d6[..., 3:]
    b1 = a1 / jnp.linalg.norm(a1, axis=-1, keepdims=True)
    b2 = a2 - jnp.sum(b1 * a2, axis=-1, keepdims=True) * b1
    b2 = b2 / jnp.linalg.norm(b2, axis=-1, keepdims=True)
    b3 = jnp.cross(b1, b2)
    return jnp.stack([b1, b2, b3], axis=-2)


def matrix_to_rotation_6d(m):
    return m[..., :2, :].reshape(*m.shape[:-2], 6)


def _round_up(n, m=128):
    return ((n + m - 1) // m) * m


# ---------------------------------------------------------------------------
# Pallas kernel: batched rigid transforms (full-slab VPU FMAs) + batched
# keypoint regression.  Layout: (3, TB, Npad) blocks, batch on sublanes.
# ---------------------------------------------------------------------------
def _hoi_kernel(scal_ref, v_ref, J_ref, ov_ref, jregT_ref,
                v_out, J_out, kpts_out, ov_out):
    # Regressor stays VMEM-resident (constant index_map across grid steps).
    jregT = jregT_ref[...]                                  # (Vp, 128)

    # Per-batch R/t columns: (TB, 1) slices, lane-broadcast against (TB, Np) slabs.
    hoi = [scal_ref[:, i:i + 1] for i in range(12)]         # 9 R (row-major) + 3 t
    obj = [scal_ref[:, 12 + i:13 + i] for i in range(12)]   # 9 R (row-major) + 3 t

    def rigid(src_ref, dst_ref, c):
        # src/dst blocks are (3, TB, Np); each coordinate is a full (TB, Np) slab.
        x, y, z = src_ref[0], src_ref[1], src_ref[2]
        ox = c[0] * x + c[1] * y + c[2] * z + c[9]
        oy = c[3] * x + c[4] * y + c[5] * z + c[10]
        oz = c[6] * x + c[7] * y + c[8] * z + c[11]
        dst_ref[0] = ox                                      # full-slab, unmasked stores
        dst_ref[1] = oy
        dst_ref[2] = oz
        return ox, oy, oz

    vx, vy, vz = rigid(v_ref, v_out, hoi)                    # SMPL vertices
    rigid(J_ref, J_out, hoi)                                 # SMPL joints
    rigid(ov_ref, ov_out, obj)                               # object vertices

    # Batched openpose-keypoint regression: (TB, Vp) @ (Vp, 128) per coordinate.
    kpts_out[0] = jnp.dot(vx, jregT, preferred_element_type=jnp.float32)
    kpts_out[1] = jnp.dot(vy, jregT, preferred_element_type=jnp.float32)
    kpts_out[2] = jnp.dot(vz, jregT, preferred_element_type=jnp.float32)


def hoi_transform_pallas(smpl_v, smpl_J, J_regressor, object_v,
                         hoi_rotmat, hoi_trans, obj_rotmat, obj_trans):
    B, V, _ = smpl_v.shape
    NJ = smpl_J.shape[1]
    Vo = object_v.shape[1]
    jreg2d = J_regressor.reshape(-1, V)                      # (K, V)
    K = jreg2d.shape[0]
    assert K >= 25, "J_regressor must have at least 25 rows for openpose keypoints"

    f32 = jnp.float32
    Vp, NJp, Vop, KP = _round_up(V), _round_up(NJ), _round_up(Vo), 128

    # ---- batch tiling: sublane-filled tiles, sized for v7x's 64 MiB VMEM -------
    TB = min(_round_up(B, 8), 64)

    def step_bytes(tb):
        per_row = 4 * 3 * 2 * (Vp + NJp + Vop + KP)          # f32, inputs + outputs
        return 2 * tb * per_row + 2 * Vp * KP * 4            # double-buffered + jregT

    while TB > 8 and step_bytes(TB) > 16 * 2 ** 20:
        TB //= 2
    Bpad = _round_up(B, TB)
    grid = (Bpad // TB,)

    # ---- wrapper-side layout plumbing: (B, N, 3) -> (3, Bpad, Npad), zero-pad ---
    def coord_slabs(x, Np):
        xt = jnp.transpose(x.astype(f32), (2, 0, 1))         # (3, B, N)
        return jnp.pad(xt, ((0, 0), (0, Bpad - x.shape[0]), (0, Np - x.shape[1])))

    v_t = coord_slabs(smpl_v, Vp)
    J_t = coord_slabs(smpl_J, NJp)
    ov_t = coord_slabs(object_v, Vop)

    # First 25 regressor rows only, transposed and zero-padded -> (Vp, 128).
    # Zero rows for v >= V keep padded vertex lanes out of the keypoint sum.
    jregT = jnp.zeros((Vp, KP), f32).at[:V, :25].set(jreg2d[:25].T.astype(f32))

    # Fold root-joint centering into the translation:
    #   (p - orig) @ R^T + t  ==  R p + (t - R @ orig)
    orig = smpl_J[:, 0]                                                  # (B, 3)
    hoi_t_eff = hoi_trans - jnp.einsum('bij,bj->bi', hoi_rotmat, orig)

    # Per-batch pack: [hoi_R (9, row-major), hoi_t_eff (3), obj_R (9), obj_t (3)]
    scal = jnp.concatenate(
        [hoi_rotmat.reshape(B, 9), hoi_t_eff.reshape(B, 3),
         obj_rotmat.reshape(B, 9), obj_trans.reshape(B, 3)], axis=-1).astype(f32)
    scal = jnp.pad(scal, ((0, Bpad - B), (0, 0)))                        # (Bpad, 24)

    out_shapes = (
        jax.ShapeDtypeStruct((3, Bpad, Vp), f32),
        jax.ShapeDtypeStruct((3, Bpad, NJp), f32),
        jax.ShapeDtypeStruct((3, Bpad, KP), f32),
        jax.ShapeDtypeStruct((3, Bpad, Vop), f32),
    )

    def batch_spec(Np):
        return pl.BlockSpec((3, TB, Np), lambda i: (0, i, 0))

    v_o, J_o, kpt_o, ov_o = pl.pallas_call(
        _hoi_kernel,
        out_shape=out_shapes,
        grid=grid,
        in_specs=[
            pl.BlockSpec((TB, 24), lambda i: (i, 0)),        # per-batch R/t pack (VMEM)
            batch_spec(Vp),                                  # SMPL vertices
            batch_spec(NJp),                                 # SMPL joints
            batch_spec(Vop),                                 # object vertices
            pl.BlockSpec((Vp, KP), lambda i: (0, 0)),        # jregT, resident across steps
        ],
        out_specs=[
            batch_spec(Vp),
            batch_spec(NJp),
            batch_spec(KP),
            batch_spec(Vop),
        ],
        compiler_params=pltpu.CompilerParams(
            dimension_semantics=("parallel",),               # megacore on v7x
            vmem_limit_bytes=32 * 2 ** 20),
    )(scal, v_t, J_t, ov_t, jregT)

    smpl_v_out = jnp.transpose(v_o[:, :B, :V], (1, 2, 0))        # (B, V, 3)
    smpl_J_out = jnp.transpose(J_o[:, :B, :NJ], (1, 2, 0))       # (B, NJ, 3)
    kpts_out = jnp.transpose(kpt_o[:, :B, :25], (1, 2, 0))       # (B, 25, 3)
    object_v_out = jnp.transpose(ov_o[:, :B, :Vo], (1, 2, 0))    # (B, Vo, 3)
    return smpl_v_out, smpl_J_out, kpts_out, object_v_out


# ---------------------------------------------------------------------------
# Synthetic SMPL stand-in (plain JAX glue)
# ---------------------------------------------------------------------------
# TODO(synk): the real SMPL model (LBS skinning + learned blend shapes) is an
# external pretrained module; this deterministic linear stand-in produces the
# same output shapes: vertices (B, V, 3), joints (B, NJ, 3).
def make_smpl_params(key, V, NJ, n_betas=10, n_pose_joints=21):
    k1, k2, k3, k4 = jax.random.split(key, 4)
    return dict(
        v_template=0.5 * jax.random.normal(k1, (V, 3), jnp.float32),
        shapedirs=0.01 * jax.random.normal(k2, (V, 3, n_betas), jnp.float32),
        posedirs=0.01 * jax.random.normal(k3, (V, 3, n_pose_joints * 9), jnp.float32),
        J_reg=jax.nn.softmax(jax.random.normal(k4, (NJ, V), jnp.float32), axis=-1),
    )


def smpl_forward(betas, body_pose_rotmat, params):
    B = betas.shape[0]
    v_shaped = params['v_template'][None] + jnp.einsum('vdk,bk->bvd', params['shapedirs'], betas)
    pose_feat = (body_pose_rotmat - jnp.eye(3, dtype=jnp.float32)).reshape(B, -1)
    v_posed = v_shaped + jnp.einsum('vdp,bp->bvd', params['posedirs'], pose_feat)
    joints = jnp.einsum('jv,bvd->bjd', params['J_reg'], v_posed)
    return v_posed, joints


# ---------------------------------------------------------------------------
# HOIInstance in JAX
# ---------------------------------------------------------------------------
class HOIInstanceJAX:
    def __init__(self, smpl_params, J_regressor, object_v,
                 smpl_betas, smpl_body_pose6d, obj_rel_trans, obj_rel_rot6d,
                 hoi_trans, hoi_rot6d):
        self.smpl_params = smpl_params
        self.object_v = object_v                                   # (B, Vo, 3)
        self.J_regressor = J_regressor[None]                       # (1, K, V)
        self.smpl_betas = smpl_betas                               # (B, 10)
        self.smpl_body_pose6d = smpl_body_pose6d                   # (B, 21, 6)
        self.obj_rel_trans = obj_rel_trans                         # (B, 3)
        self.obj_rel_rot6d = obj_rel_rot6d                         # (B, 6)
        self.hoi_trans = hoi_trans                                 # (B, 3)
        self.hoi_rot6d = hoi_rot6d                                 # (B, 6)

    def forward(self):
        batch_size = self.smpl_betas.shape[0]
        smpl_body_rotmat = rotation_6d_to_matrix(self.smpl_body_pose6d)       # (B, 21, 3, 3)
        smpl_v_raw, smpl_J_raw = smpl_forward(self.smpl_betas, smpl_body_rotmat, self.smpl_params)

        hoi_rotmat = rotation_6d_to_matrix(self.hoi_rot6d)                    # (B, 3, 3)
        obj_rel_rotmat = rotation_6d_to_matrix(self.obj_rel_rot6d)            # (B, 3, 3)
        obj_rotmat = jnp.matmul(hoi_rotmat, obj_rel_rotmat)                   # (B, 3, 3)
        obj_trans = jnp.matmul(hoi_rotmat,
                               self.obj_rel_trans.reshape(batch_size, 3, 1)
                               )[..., 0] + self.hoi_trans                     # (B, 3)

        # --- hot path in Pallas ---
        smpl_v, smpl_J, openpose_kpts, object_v = hoi_transform_pallas(
            smpl_v_raw, smpl_J_raw, self.J_regressor, self.object_v,
            hoi_rotmat, self.hoi_trans, obj_rotmat, obj_trans)

        return {
            'smpl_betas': self.smpl_betas,
            'smpl_body_pose6d': self.smpl_body_pose6d,
            'smpl_body_rotmat': smpl_body_rotmat,
            'smpl_v': smpl_v,
            'smpl_J': smpl_J,
            'openpose_kpts': openpose_kpts,
            'obj_rel_trans': self.obj_rel_trans,
            'obj_rel_rotmat': obj_rel_rotmat,
            'obj_rel_rot6d': self.obj_rel_rot6d,
            'obj_rotmat': obj_rotmat,
            'obj_trans': obj_trans,
            'object_v': object_v,
            'hoi_rot6d': self.hoi_rot6d,
            'hoi_rotmat': hoi_rotmat,
            'hoi_trans': self.hoi_trans,
        }


# ---------------------------------------------------------------------------
# Pure-JAX reference of the same forward (for correctness check)
# ---------------------------------------------------------------------------
def forward_reference(inst):
    B = inst.smpl_betas.shape[0]
    body_rotmat = rotation_6d_to_matrix(inst.smpl_body_pose6d)
    smpl_v, smpl_J = smpl_forward(inst.smpl_betas, body_rotmat, inst.smpl_params)
    orig = smpl_J[:, 0:1]
    smpl_v = smpl_v - orig
    smpl_J = smpl_J - orig
    hoi_rotmat = rotation_6d_to_matrix(inst.hoi_rot6d)
    smpl_v = jnp.matmul(smpl_v, jnp.swapaxes(hoi_rotmat, 1, 2)) + inst.hoi_trans.reshape(B, 1, 3)
    smpl_J = jnp.matmul(smpl_J, jnp.swapaxes(hoi_rotmat, 1, 2)) + inst.hoi_trans.reshape(B, 1, 3)
    openpose_kpts = jnp.matmul(inst.J_regressor, smpl_v)[:, :25]
    obj_rel_rotmat = rotation_6d_to_matrix(inst.obj_rel_rot6d)
    obj_rotmat = jnp.matmul(hoi_rotmat, obj_rel_rotmat)
    obj_trans = jnp.matmul(hoi_rotmat, inst.obj_rel_trans.reshape(B, 3, 1))[..., 0] + inst.hoi_trans
    object_v = jnp.matmul(inst.object_v, jnp.swapaxes(obj_rotmat, 1, 2)) + obj_trans.reshape(B, 1, 3)
    return smpl_v, smpl_J, openpose_kpts, object_v


# ---------------------------------------------------------------------------
if __name__ == "__main__":
    B, V, NJ, K, Vo = 2, 64, 24, 32, 48   # batch, smpl verts, smpl joints, regressor rows, object verts

    key = jax.random.PRNGKey(0)
    ks = jax.random.split(key, 10)

    smpl_params = make_smpl_params(ks[0], V, NJ)
    J_regressor = jax.nn.softmax(jax.random.normal(ks[1], (K, V), jnp.float32), axis=-1)
    object_v = jax.random.normal(ks[2], (B, Vo, 3), jnp.float32)

    id6 = matrix_to_rotation_6d(jnp.eye(3, dtype=jnp.float32))   # [1,0,0,0,1,0]

    smpl_betas = 0.3 * jax.random.normal(ks[3], (B, 10), jnp.float32)
    smpl_body_pose6d = (jnp.broadcast_to(id6, (B, 21, 6))
                        + 0.05 * jax.random.normal(ks[4], (B, 21, 6), jnp.float32))
    obj_rel_trans = 0.2 * jax.random.normal(ks[5], (B, 3), jnp.float32)
    obj_rel_rot6d = (jnp.broadcast_to(id6, (B, 6))
                     + 0.05 * jax.random.normal(ks[6], (B, 6), jnp.float32))
    hoi_trans = 0.5 * jax.random.normal(ks[7], (B, 3), jnp.float32)
    hoi_rot6d = (jnp.broadcast_to(id6, (B, 6))
                 + 0.05 * jax.random.normal(ks[8], (B, 6), jnp.float32))

    inst = HOIInstanceJAX(smpl_params, J_regressor, object_v,
                          smpl_betas, smpl_body_pose6d, obj_rel_trans, obj_rel_rot6d,
                          hoi_trans, hoi_rot6d)

    results = inst.forward()
    jax.block_until_ready(results)

    ref_v, ref_J, ref_kpts, ref_ov = forward_reference(inst)
    assert jnp.allclose(results['smpl_v'], ref_v, atol=1e-4, rtol=1e-4)
    assert jnp.allclose(results['smpl_J'], ref_J, atol=1e-4, rtol=1e-4)
    assert jnp.allclose(results['openpose_kpts'], ref_kpts, atol=1e-4, rtol=1e-4)
    assert jnp.allclose(results['object_v'], ref_ov, atol=1e-4, rtol=1e-4)
    assert results['smpl_v'].shape == (B, V, 3)
    assert results['smpl_J'].shape == (B, NJ, 3)
    assert results['openpose_kpts'].shape == (B, 25, 3)
    assert results['object_v'].shape == (B, Vo, 3)

    print("KERNEL_OK")
</pallas_src>

<mosaic_0001>
module attributes {stable_mosaic.version = 11 : i64} {
  func.func @_hoi_kernel(%arg0: i32, %arg1: memref<8x24xf32, #tpu.memory_space<vmem>>, %arg2: memref<3x8x128xf32, #tpu.memory_space<vmem>>, %arg3: memref<3x8x128xf32, #tpu.memory_space<vmem>>, %arg4: memref<3x8x128xf32, #tpu.memory_space<vmem>>, %arg5: memref<128x128xf32, #tpu.memory_space<vmem>>, %arg6: memref<3x8x128xf32, #tpu.memory_space<vmem>>, %arg7: memref<3x8x128xf32, #tpu.memory_space<vmem>>, %arg8: memref<3x8x128xf32, #tpu.memory_space<vmem>>, %arg9: memref<3x8x128xf32, #tpu.memory_space<vmem>>) attributes {dimension_semantics = [#tpu.dimension_semantics<parallel>], iteration_bounds = array<i64: 1>, scalar_prefetch = 0 : i64, scratch_operands = 0 : i64, tpu.core_type = #tpu.core_type<tc>, window_params = [{transform_indices = @transform_0, window_bounds = array<i64: 8, 24>}, {transform_indices = @transform_1, window_bounds = array<i64: 3, 8, 128>}, {transform_indices = @transform_2, window_bounds = array<i64: 3, 8, 128>}, {transform_indices = @transform_3, window_bounds = array<i64: 3, 8, 128>}, {pipeline_mode = #tpu.pipeline_mode<synchronous>, transform_indices = @transform_4, window_bounds = array<i64: 128, 128>}, {transform_indices = @transform_5, window_bounds = array<i64: 3, 8, 128>}, {transform_indices = @transform_6, window_bounds = array<i64: 3, 8, 128>}, {transform_indices = @transform_7, window_bounds = array<i64: 3, 8, 128>}, {transform_indices = @transform_8, window_bounds = array<i64: 3, 8, 128>}]} {
    %c0 = arith.constant 0 : index
    %c0_0 = arith.constant 0 : index
    %0 = vector.load %arg5[%c0, %c0_0] : memref<128x128xf32, #tpu.memory_space<vmem>>, vector<128x128xf32>
    %c0_1 = arith.constant 0 : index
    %c0_2 = arith.constant 0 : index
    %1 = vector.load %arg1[%c0_1, %c0_2] : memref<8x24xf32, #tpu.memory_space<vmem>>, vector<8x1xf32>
    %c0_3 = arith.constant 0 : index
    %c1 = arith.constant 1 : index
    %2 = vector.load %arg1[%c0_3, %c1] : memref<8x24xf32, #tpu.memory_space<vmem>>, vector<8x1xf32>
    %c0_4 = arith.constant 0 : index
    %c2 = arith.constant 2 : index
    %3 = vector.load %arg1[%c0_4, %c2] : memref<8x24xf32, #tpu.memory_space<vmem>>, vector<8x1xf32>
    %c0_5 = arith.constant 0 : index
    %c3 = arith.constant 3 : index
    %4 = vector.load %arg1[%c0_5, %c3] : memref<8x24xf32, #tpu.memory_space<vmem>>, vector<8x1xf32>
    %c0_6 = arith.constant 0 : index
    %c4 = arith.constant 4 : index
    %5 = vector.load %arg1[%c0_6, %c4] : memref<8x24xf32, #tpu.memory_space<vmem>>, vector<8x1xf32>
    %c0_7 = arith.constant 0 : index
    %c5 = arith.constant 5 : index
    %6 = vector.load %arg1[%c0_7, %c5] : memref<8x24xf32, #tpu.memory_space<vmem>>, vector<8x1xf32>
    %c0_8 = arith.constant 0 : index
    %c6 = arith.constant 6 : index
    %7 = vector.load %arg1[%c0_8, %c6] : memref<8x24xf32, #tpu.memory_space<vmem>>, vector<8x1xf32>
    %c0_9 = arith.constant 0 : index
    %c7 = arith.constant 7 : index
    %8 = vector.load %arg1[%c0_9, %c7] : memref<8x24xf32, #tpu.memory_space<vmem>>, vector<8x1xf32>
    %c0_10 = arith.constant 0 : index
    %c8 = arith.constant 8 : index
    %9 = vector.load %arg1[%c0_10, %c8] : memref<8x24xf32, #tpu.memory_space<vmem>>, vector<8x1xf32>
    %c0_11 = arith.constant 0 : index
    %c9 = arith.constant 9 : index
    %10 = vector.load %arg1[%c0_11, %c9] : memref<8x24xf32, #tpu.memory_space<vmem>>, vector<8x1xf32>
    %c0_12 = arith.constant 0 : index
    %c10 = arith.constant 10 : index
    %11 = vector.load %arg1[%c0_12, %c10] : memref<8x24xf32, #tpu.memory_space<vmem>>, vector<8x1xf32>
    %c0_13 = arith.constant 0 : index
    %c11 = arith.constant 11 : index
    %12 = vector.load %arg1[%c0_13, %c11] : memref<8x24xf32, #tpu.memory_space<vmem>>, vector<8x1xf32>
    %c0_14 = arith.constant 0 : index
    %c12 = arith.constant 12 : index
    %13 = vector.load %arg1[%c0_14, %c12] : memref<8x24xf32, #tpu.memory_space<vmem>>, vector<8x1xf32>
    %c0_15 = arith.constant 0 : index
    %c13 = arith.constant 13 : index
    %14 = vector.load %arg1[%c0_15, %c13] : memref<8x24xf32, #tpu.memory_space<vmem>>, vector<8x1xf32>
    %c0_16 = arith.constant 0 : index
    %c14 = arith.constant 14 : index
    %15 = vector.load %arg1[%c0_16, %c14] : memref<8x24xf32, #tpu.memory_space<vmem>>, vector<8x1xf32>
    %c0_17 = arith.constant 0 : index
    %c15 = arith.constant 15 : index
    %16 = vector.load %arg1[%c0_17, %c15] : memref<8x24xf32, #tpu.memory_space<vmem>>, vector<8x1xf32>
    %c0_18 = arith.constant 0 : index
    %c16 = arith.constant 16 : index
    %17 = vector.load %arg1[%c0_18, %c16] : memref<8x24xf32, #tpu.memory_space<vmem>>, vector<8x1xf32>
    %c0_19 = arith.constant 0 : index
    %c17 = arith.constant 17 : index
    %18 = vector.load %arg1[%c0_19, %c17] : memref<8x24xf32, #tpu.memory_space<vmem>>, vector<8x1xf32>
    %c0_20 = arith.constant 0 : index
    %c18 = arith.constant 18 : index
    %19 = vector.load %arg1[%c0_20, %c18] : memref<8x24xf32, #tpu.memory_space<vmem>>, vector<8x1xf32>
    %c0_21 = arith.constant 0 : index
    %c19 = arith.constant 19 : index
    %20 = vector.load %arg1[%c0_21, %c19] : memref<8x24xf32, #tpu.memory_space<vmem>>, vector<8x1xf32>
    %c0_22 = arith.constant 0 : index
    %c20 = arith.constant 20 : index
    %21 = vector.load %arg1[%c0_22, %c20] : memref<8x24xf32, #tpu.memory_space<vmem>>, vector<8x1xf32>
    %c0_23 = arith.constant 0 : index
    %c21 = arith.constant 21 : index
    %22 = vector.load %arg1[%c0_23, %c21] : memref<8x24xf32, #tpu.memory_space<vmem>>, vector<8x1xf32>
    %c0_24 = arith.constant 0 : index
    %c22 = arith.constant 22 : index
    %23 = vector.load %arg1[%c0_24, %c22] : memref<8x24xf32, #tpu.memory_space<vmem>>, vector<8x1xf32>
    %c0_25 = arith.constant 0 : index
    %c23 = arith.constant 23 : index
    %24 = vector.load %arg1[%c0_25, %c23] : memref<8x24xf32, #tpu.memory_space<vmem>>, vector<8x1xf32>
    %c0_26 = arith.constant 0 : index
    %c0_27 = arith.constant 0 : index
    %c0_28 = arith.constant 0 : index
    %25 = vector.load %arg2[%c0_26, %c0_27, %c0_28] : memref<3x8x128xf32, #tpu.memory_space<vmem>>, vector<1x8x128xf32>
    %26 = vector.shape_cast %25 : vector<1x8x128xf32> to vector<8x128xf32>
    %c1_29 = arith.constant 1 : index
    %c0_30 = arith.constant 0 : index
    %c0_31 = arith.constant 0 : index
    %27 = vector.load %arg2[%c1_29, %c0_30, %c0_31] : memref<3x8x128xf32, #tpu.memory_space<vmem>>, vector<1x8x128xf32>
    %28 = vector.shape_cast %27 : vector<1x8x128xf32> to vector<8x128xf32>
    %c2_32 = arith.constant 2 : index
    %c0_33 = arith.constant 0 : index
    %c0_34 = arith.constant 0 : index
    %29 = vector.load %arg2[%c2_32, %c0_33, %c0_34] : memref<3x8x128xf32, #tpu.memory_space<vmem>>, vector<1x8x128xf32>
    %30 = vector.shape_cast %29 : vector<1x8x128xf32> to vector<8x128xf32>
    %31 = vector.broadcast %1 : vector<8x1xf32> to vector<8x128xf32>
    %32 = arith.mulf %31, %26 : vector<8x128xf32>
    %33 = vector.broadcast %2 : vector<8x1xf32> to vector<8x128xf32>
    %34 = arith.mulf %33, %28 : vector<8x128xf32>
    %35 = arith.addf %32, %34 : vector<8x128xf32>
    %36 = vector.broadcast %3 : vector<8x1xf32> to vector<8x128xf32>
    %37 = arith.mulf %36, %30 : vector<8x128xf32>
    %38 = arith.addf %35, %37 : vector<8x128xf32>
    %39 = vector.broadcast %10 : vector<8x1xf32> to vector<8x128xf32>
    %40 = arith.addf %38, %39 : vector<8x128xf32>
    %41 = vector.broadcast %4 : vector<8x1xf32> to vector<8x128xf32>
    %42 = arith.mulf %41, %26 : vector<8x128xf32>
    %43 = vector.broadcast %5 : vector<8x1xf32> to vector<8x128xf32>
    %44 = arith.mulf %43, %28 : vector<8x128xf32>
    %45 = arith.addf %42, %44 : vector<8x128xf32>
    %46 = vector.broadcast %6 : vector<8x1xf32> to vector<8x128xf32>
    %47 = arith.mulf %46, %30 : vector<8x128xf32>
    %48 = arith.addf %45, %47 : vector<8x128xf32>
    %49 = vector.broadcast %11 : vector<8x1xf32> to vector<8x128xf32>
    %50 = arith.addf %48, %49 : vector<8x128xf32>
    %51 = vector.broadcast %7 : vector<8x1xf32> to vector<8x128xf32>
    %52 = arith.mulf %51, %26 : vector<8x128xf32>
    %53 = vector.broadcast %8 : vector<8x1xf32> to vector<8x128xf32>
    %54 = arith.mulf %53, %28 : vector<8x128xf32>
    %55 = arith.addf %52, %54 : vector<8x128xf32>
    %56 = vector.broadcast %9 : vector<8x1xf32> to vector<8x128xf32>
    %57 = arith.mulf %56, %30 : vector<8x128xf32>
    %58 = arith.addf %55, %57 : vector<8x128xf32>
    %59 = vector.broadcast %12 : vector<8x1xf32> to vector<8x128xf32>
    %60 = arith.addf %58, %59 : vector<8x128xf32>
    %c0_35 = arith.constant 0 : index
    %c0_36 = arith.constant 0 : index
    %c0_37 = arith.constant 0 : index
    %61 = vector.load %arg6[%c0_35, %c0_36, %c0_37] : memref<3x8x128xf32, #tpu.memory_space<vmem>>, vector<1x8x128xf32>
    %62 = vector.shape_cast %61 : vector<1x8x128xf32> to vector<8x128xf32>
    %63 = vector.shape_cast %40 : vector<8x128xf32> to vector<1x8x128xf32>
    tpu.vector_store %arg6[%c0_35, %c0_36, %c0_37], %63 {strides = array<i32>} : memref<3x8x128xf32, #tpu.memory_space<vmem>>, vector<1x8x128xf32>,
    %c1_38 = arith.constant 1 : index
    %c0_39 = arith.constant 0 : index
    %c0_40 = arith.constant 0 : index
    %64 = vector.load %arg6[%c1_38, %c0_39, %c0_40] : memref<3x8x128xf32, #tpu.memory_space<vmem>>, vector<1x8x128xf32>
    %65 = vector.shape_cast %64 : vector<1x8x128xf32> to vector<8x128xf32>
    %66 = vector.shape_cast %50 : vector<8x128xf32> to vector<1x8x128xf32>
    tpu.vector_store %arg6[%c1_38, %c0_39, %c0_40], %66 {strides = array<i32>} : memref<3x8x128xf32, #tpu.memory_space<vmem>>, vector<1x8x128xf32>,
    %c2_41 = arith.constant 2 : index
    %c0_42 = arith.constant 0 : index
    %c0_43 = arith.constant 0 : index
    %67 = vector.load %arg6[%c2_41, %c0_42, %c0_43] : memref<3x8x128xf32, #tpu.memory_space<vmem>>, vector<1x8x128xf32>
    %68 = vector.shape_cast %67 : vector<1x8x128xf32> to vector<8x128xf32>
    %69 = vector.shape_cast %60 : vector<8x128xf32> to vector<1x8x128xf32>
    tpu.vector_store %arg6[%c2_41, %c0_42, %c0_43], %69 {strides = array<i32>} : memref<3x8x128xf32, #tpu.memory_space<vmem>>, vector<1x8x128xf32>,
    %c0_44 = arith.constant 0 : index
    %c0_45 = arith.constant 0 : index
    %c0_46 = arith.constant 0 : index
    %70 = vector.load %arg3[%c0_44, %c0_45, %c0_46] : memref<3x8x128xf32, #tpu.memory_space<vmem>>, vector<1x8x128xf32>
    %71 = vector.shape_cast %70 : vector<1x8x128xf32> to vector<8x128xf32>
    %c1_47 = arith.constant 1 : index
    %c0_48 = arith.constant 0 : index
    %c0_49 = arith.constant 0 : index
    %72 = vector.load %arg3[%c1_47, %c0_48, %c0_49] : memref<3x8x128xf32, #tpu.memory_space<vmem>>, vector<1x8x128xf32>
    %73 = vector.shape_cast %72 : vector<1x8x128xf32> to vector<8x128xf32>
    %c2_50 = arith.constant 2 : index
    %c0_51 = arith.constant 0 : index
    %c0_52 = arith.constant 0 : index
    %74 = vector.load %arg3[%c2_50, %c0_51, %c0_52] : memref<3x8x128xf32, #tpu.memory_space<vmem>>, vector<1x8x128xf32>
    %75 = vector.shape_cast %74 : vector<1x8x128xf32> to vector<8x128xf32>
    %76 = vector.broadcast %1 : vector<8x1xf32> to vector<8x128xf32>
    %77 = arith.mulf %76, %71 : vector<8x128xf32>
    %78 = vector.broadcast %2 : vector<8x1xf32> to vector<8x128xf32>
    %79 = arith.mulf %78, %73 : vector<8x128xf32>
    %80 = arith.addf %77, %79 : vector<8x128xf32>
    %81 = vector.broadcast %3 : vector<8x1xf32> to vector<8x128xf32>
    %82 = arith.mulf %81, %75 : vector<8x128xf32>
    %83 = arith.addf %80, %82 : vector<8x128xf32>
    %84 = vector.broadcast %10 : vector<8x1xf32> to vector<8x128xf32>
    %85 = arith.addf %83, %84 : vector<8x128xf32>
    %86 = vector.broadcast %4 : vector<8x1xf32> to vector<8x128xf32>
    %87 = arith.mulf %86, %71 : vector<8x128xf32>
    %88 = vector.broadcast %5 : vector<8x1xf32> to vector<8x128xf32>
    %89 = arith.mulf %88, %73 : vector<8x128xf32>
    %90 = arith.addf %87, %89 : vector<8x128xf32>
    %91 = vector.broadcast %6 : vector<8x1xf32> to vector<8x128xf32>
    %92 = arith.mulf %91, %75 : vector<8x128xf32>
    %93 = arith.addf %90, %92 : vector<8x128xf32>
    %94 = vector.broadcast %11 : vector<8x1xf32> to vector<8x128xf32>
    %95 = arith.addf %93, %94 : vector<8x128xf32>
    %96 = vector.broadcast %7 : vector<8x1xf32> to vector<8x128xf32>
    %97 = arith.mulf %96, %71 : vector<8x128xf32>
    %98 = vector.broadcast %8 : vector<8x1xf32> to vector<8x128xf32>
    %99 = arith.mulf %98, %73 : vector<8x128xf32>
    %100 = arith.addf %97, %99 : vector<8x128xf32>
    %101 = vector.broadcast %9 : vector<8x1xf32> to vector<8x128xf32>
    %102 = arith.mulf %101, %75 : vector<8x128xf32>
    %103 = arith.addf %100, %102 : vector<8x128xf32>
    %104 = vector.broadcast %12 : vector<8x1xf32> to vector<8x128xf32>
    %105 = arith.addf %103, %104 : vector<8x128xf32>
    %c0_53 = arith.constant 0 : index
    %c0_54 = arith.constant 0 : index
    %c0_55 = arith.constant 0 : index
    %106 = vector.load %arg7[%c0_53, %c0_54, %c0_55] : memref<3x8x128xf32, #tpu.memory_space<vmem>>, vector<1x8x128xf32>
    %107 = vector.shape_cast %106 : vector<1x8x128xf32> to vector<8x128xf32>
    %108 = vector.shape_cast %85 : vector<8x128xf32> to vector<1x8x128xf32>
    tpu.vector_store %arg7[%c0_53, %c0_54, %c0_55], %108 {strides = array<i32>} : memref<3x8x128xf32, #tpu.memory_space<vmem>>, vector<1x8x128xf32>,
    %c1_56 = arith.constant 1 : index
    %c0_57 = arith.constant 0 : index
    %c0_58 = arith.constant 0 : index
    %109 = vector.load %arg7[%c1_56, %c0_57, %c0_58] : memref<3x8x128xf32, #tpu.memory_space<vmem>>, vector<1x8x128xf32>
    %110 = vector.shape_cast %109 : vector<1x8x128xf32> to vector<8x128xf32>
    %111 = vector.shape_cast %95 : vector<8x128xf32> to vector<1x8x128xf32>
    tpu.vector_store %arg7[%c1_56, %c0_57, %c0_58], %111 {strides = array<i32>} : memref<3x8x128xf32, #tpu.memory_space<vmem>>, vector<1x8x128xf32>,
    %c2_59 = arith.constant 2 : index
    %c0_60 = arith.constant 0 : index
    %c0_61 = arith.constant 0 : index
    %112 = vector.load %arg7[%c2_59, %c0_60, %c0_61] : memref<3x8x128xf32, #tpu.memory_space<vmem>>, vector<1x8x128xf32>
    %113 = vector.shape_cast %112 : vector<1x8x128xf32> to vector<8x128xf32>
    %114 = vector.shape_cast %105 : vector<8x128xf32> to vector<1x8x128xf32>
    tpu.vector_store %arg7[%c2_59, %c0_60, %c0_61], %114 {strides = array<i32>} : memref<3x8x128xf32, #tpu.memory_space<vmem>>, vector<1x8x128xf32>,
    %c0_62 = arith.constant 0 : index
    %c0_63 = arith.constant 0 : index
    %c0_64 = arith.constant 0 : index
    %115 = vector.load %arg4[%c0_62, %c0_63, %c0_64] : memref<3x8x128xf32, #tpu.memory_space<vmem>>, vector<1x8x128xf32>
    %116 = vector.shape_cast %115 : vector<1x8x128xf32> to vector<8x128xf32>
    %c1_65 = arith.constant 1 : index
    %c0_66 = arith.constant 0 : index
    %c0_67 = arith.constant 0 : index
    %117 = vector.load %arg4[%c1_65, %c0_66, %c0_67] : memref<3x8x128xf32, #tpu.memory_space<vmem>>, vector<1x8x128xf32>
    %118 = vector.shape_cast %117 : vector<1x8x128xf32> to vector<8x128xf32>
    %c2_68 = arith.constant 2 : index
    %c0_69 = arith.constant 0 : index
    %c0_70 = arith.constant 0 : index
    %119 = vector.load %arg4[%c2_68, %c0_69, %c0_70] : memref<3x8x128xf32, #tpu.memory_space<vmem>>, vector<1x8x128xf32>
    %120 = vector.shape_cast %119 : vector<1x8x128xf32> to vector<8x128xf32>
    %121 = vector.broadcast %13 : vector<8x1xf32> to vector<8x128xf32>
    %122 = arith.mulf %121, %116 : vector<8x128xf32>
    %123 = vector.broadcast %14 : vector<8x1xf32> to vector<8x128xf32>
    %124 = arith.mulf %123, %118 : vector<8x128xf32>
    %125 = arith.addf %122, %124 : vector<8x128xf32>
    %126 = vector.broadcast %15 : vector<8x1xf32> to vector<8x128xf32>
    %127 = arith.mulf %126, %120 : vector<8x128xf32>
    %128 = arith.addf %125, %127 : vector<8x128xf32>
    %129 = vector.broadcast %22 : vector<8x1xf32> to vector<8x128xf32>
    %130 = arith.addf %128, %129 : vector<8x128xf32>
    %131 = vector.broadcast %16 : vector<8x1xf32> to vector<8x128xf32>
    %132 = arith.mulf %131, %116 : vector<8x128xf32>
    %133 = vector.broadcast %17 : vector<8x1xf32> to vector<8x128xf32>
    %134 = arith.mulf %133, %118 : vector<8x128xf32>
    %135 = arith.addf %132, %134 : vector<8x128xf32>
    %136 = vector.broadcast %18 : vector<8x1xf32> to vector<8x128xf32>
    %137 = arith.mulf %136, %120 : vector<8x128xf32>
    %138 = arith.addf %135, %137 : vector<8x128xf32>
    %139 = vector.broadcast %23 : vector<8x1xf32> to vector<8x128xf32>
    %140 = arith.addf %138, %139 : vector<8x128xf32>
    %141 = vector.broadcast %19 : vector<8x1xf32> to vector<8x128xf32>
    %142 = arith.mulf %141, %116 : vector<8x128xf32>
    %143 = vector.broadcast %20 : vector<8x1xf32> to vector<8x128xf32>
    %144 = arith.mulf %143, %118 : vector<8x128xf32>
    %145 = arith.addf %142, %144 : vector<8x128xf32>
    %146 = vector.broadcast %21 : vector<8x1xf32> to vector<8x128xf32>
    %147 = arith.mulf %146, %120 : vector<8x128xf32>
    %148 = arith.addf %145, %147 : vector<8x128xf32>
    %149 = vector.broadcast %24 : vector<8x1xf32> to vector<8x128xf32>
    %150 = arith.addf %148, %149 : vector<8x128xf32>
    %c0_71 = arith.constant 0 : index
    %c0_72 = arith.constant 0 : index
    %c0_73 = arith.constant 0 : index
    %151 = vector.load %arg9[%c0_71, %c0_72, %c0_73] : memref<3x8x128xf32, #tpu.memory_space<vmem>>, vector<1x8x128xf32>
    %152 = vector.shape_cast %151 : vector<1x8x128xf32> to vector<8x128xf32>
    %153 = vector.shape_cast %130 : vector<8x128xf32> to vector<1x8x128xf32>
    tpu.vector_store %arg9[%c0_71, %c0_72, %c0_73], %153 {strides = array<i32>} : memref<3x8x128xf32, #tpu.memory_space<vmem>>, vector<1x8x128xf32>,
    %c1_74 = arith.constant 1 : index
    %c0_75 = arith.constant 0 : index
    %c0_76 = arith.constant 0 : index
    %154 = vector.load %arg9[%c1_74, %c0_75, %c0_76] : memref<3x8x128xf32, #tpu.memory_space<vmem>>, vector<1x8x128xf32>
    %155 = vector.shape_cast %154 : vector<1x8x128xf32> to vector<8x128xf32>
    %156 = vector.shape_cast %140 : vector<8x128xf32> to vector<1x8x128xf32>
    tpu.vector_store %arg9[%c1_74, %c0_75, %c0_76], %156 {strides = array<i32>} : memref<3x8x128xf32, #tpu.memory_space<vmem>>, vector<1x8x128xf32>,
    %c2_77 = arith.constant 2 : index
    %c0_78 = arith.constant 0 : index
    %c0_79 = arith.constant 0 : index
    %157 = vector.load %arg9[%c2_77, %c0_78, %c0_79] : memref<3x8x128xf32, #tpu.memory_space<vmem>>, vector<1x8x128xf32>
    %158 = vector.shape_cast %157 : vector<1x8x128xf32> to vector<8x128xf32>
    %159 = vector.shape_cast %150 : vector<8x128xf32> to vector<1x8x128xf32>
    tpu.vector_store %arg9[%c2_77, %c0_78, %c0_79], %159 {strides = array<i32>} : memref<3x8x128xf32, #tpu.memory_space<vmem>>, vector<1x8x128xf32>,
    %cst = arith.constant dense<0.000000e+00> : vector<8x128xf32>
    %160 = tpu.matmul %40, %0, %cst {dimension_numbers = #tpu.dot_dimension_numbers<[1], [0], [0], [1], [0, 0, 1, 1], [], []>} : vector<8x128xf32>, vector<128x128xf32>, vector<8x128xf32> -> vector<8x128xf32>
    %c0_80 = arith.constant 0 : index
    %c0_81 = arith.constant 0 : index
    %c0_82 = arith.constant 0 : index
    %161 = vector.load %arg8[%c0_80, %c0_81, %c0_82] : memref<3x8x128xf32, #tpu.memory_space<vmem>>, vector<1x8x128xf32>
    %162 = vector.shape_cast %161 : vector<1x8x128xf32> to vector<8x128xf32>
    %163 = vector.shape_cast %160 : vector<8x128xf32> to vector<1x8x128xf32>
    tpu.vector_store %arg8[%c0_80, %c0_81, %c0_82], %163 {strides = array<i32>} : memref<3x8x128xf32, #tpu.memory_space<vmem>>, vector<1x8x128xf32>,
    %cst_83 = arith.constant dense<0.000000e+00> : vector<8x128xf32>
    %164 = tpu.matmul %50, %0, %cst_83 {dimension_numbers = #tpu.dot_dimension_numbers<[1], [0], [0], [1], [0, 0, 1, 1], [], []>} : vector<8x128xf32>, vector<128x128xf32>, vector<8x128xf32> -> vector<8x128xf32>
    %c1_84 = arith.constant 1 : index
    %c0_85 = arith.constant 0 : index
    %c0_86 = arith.constant 0 : index
    %165 = vector.load %arg8[%c1_84, %c0_85, %c0_86] : memref<3x8x128xf32, #tpu.memory_space<vmem>>, vector<1x8x128xf32>
    %166 = vector.shape_cast %165 : vector<1x8x128xf32> to vector<8x128xf32>
    %167 = vector.shape_cast %164 : vector<8x128xf32> to vector<1x8x128xf32>
    tpu.vector_store %arg8[%c1_84, %c0_85, %c0_86], %167 {strides = array<i32>} : memref<3x8x128xf32, #tpu.memory_space<vmem>>, vector<1x8x128xf32>,
    %cst_87 = arith.constant dense<0.000000e+00> : vector<8x128xf32>
    %168 = tpu.matmul %60, %0, %cst_87 {dimension_numbers = #tpu.dot_dimension_numbers<[1], [0], [0], [1], [0, 0, 1, 1], [], []>} : vector<8x128xf32>, vector<128x128xf32>, vector<8x128xf32> -> vector<8x128xf32>
    %c2_88 = arith.constant 2 : index
    %c0_89 = arith.constant 0 : index
    %c0_90 = arith.constant 0 : index
    %169 = vector.load %arg8[%c2_88, %c0_89, %c0_90] : memref<3x8x128xf32, #tpu.memory_space<vmem>>, vector<1x8x128xf32>
    %170 = vector.shape_cast %169 : vector<1x8x128xf32> to vector<8x128xf32>
    %171 = vector.shape_cast %168 : vector<8x128xf32> to vector<1x8x128xf32>
    tpu.vector_store %arg8[%c2_88, %c0_89, %c0_90], %171 {strides = array<i32>} : memref<3x8x128xf32, #tpu.memory_space<vmem>>, vector<1x8x128xf32>,
    return
  }
  func.func @transform_0(%arg0: i32) -> (i32, i32) {
    %c0_i32 = arith.constant 0 : i32
    %c0_i32_0 = arith.constant 0 : i32
    return %arg0, %c0_i32 : i32, i32
  }
  func.func @transform_1(%arg0: i32) -> (i32, i32, i32) {
    %c0_i32 = arith.constant 0 : i32
    %c0_i32_0 = arith.constant 0 : i32
    %c0_i32_1 = arith.constant 0 : i32
    return %c0_i32, %arg0, %c0_i32_0 : i32, i32, i32
  }
  func.func @transform_2(%arg0: i32) -> (i32, i32, i32) {
    %c0_i32 = arith.constant 0 : i32
    %c0_i32_0 = arith.constant 0 : i32
    %c0_i32_1 = arith.constant 0 : i32
    return %c0_i32, %arg0, %c0_i32_0 : i32, i32, i32
  }
  func.func @transform_3(%arg0: i32) -> (i32, i32, i32) {
    %c0_i32 = arith.constant 0 : i32
    %c0_i32_0 = arith.constant 0 : i32
    %c0_i32_1 = arith.constant 0 : i32
    return %c0_i32, %arg0, %c0_i32_0 : i32, i32, i32
  }
  func.func @transform_4(%arg0: i32) -> (i32, i32) {
    %c0_i32 = arith.constant 0 : i32
    %c0_i32_0 = arith.constant 0 : i32
    %c0_i32_1 = arith.constant 0 : i32
    return %c0_i32, %c0_i32_0 : i32, i32
  }
  func.func @transform_5(%arg0: i32) -> (i32, i32, i32) {
    %c0_i32 = arith.constant 0 : i32
    %c0_i32_0 = arith.constant 0 : i32
    %c0_i32_1 = arith.constant 0 : i32
    return %c0_i32, %arg0, %c0_i32_0 : i32, i32, i32
  }
  func.func @transform_6(%arg0: i32) -> (i32, i32, i32) {
    %c0_i32 = arith.constant 0 : i32
    %c0_i32_0 = arith.constant 0 : i32
    %c0_i32_1 = arith.constant 0 : i32
    return %c0_i32, %arg0, %c0_i32_0 : i32, i32, i32
  }
  func.func @transform_7(%arg0: i32) -> (i32, i32, i32) {
    %c0_i32 = arith.constant 0 : i32
    %c0_i32_0 = arith.constant 0 : i32
    %c0_i32_1 = arith.constant 0 : i32
    return %c0_i32, %arg0, %c0_i32_0 : i32, i32, i32
  }
  func.func @transform_8(%arg0: i32) -> (i32, i32, i32) {
    %c0_i32 = arith.constant 0 : i32
    %c0_i32_0 = arith.constant 0 : i32
    %c0_i32_1 = arith.constant 0 : i32
    return %c0_i32, %arg0, %c0_i32_0 : i32, i32, i32
  }
}

</mosaic_0001>

<llo_original>
// kernel: tpu_custom_call.1
$region0: #{tpu_custom_call.1}
  #allocation0 [shape = 'u32[]', space=smem, size = 0x4, offset = 0x4, fixed_abs, tag = 'smem constant byte address 0x4 - core index']
  #allocation1 [shape = 'u32[144,128]{1,0:T(1,128)}', space=vmem, size = 0x12000, scoped, tag = 'internal scratch']
  %s0 = inlined_call_operand.hbm [shape: f32[8,24], index: 0, kind: input, shape index: {}]
  %s1 = inlined_call_operand.hbm [shape: f32[3,8,128], index: 1, kind: input, shape index: {}]
  %s2 = inlined_call_operand.hbm [shape: f32[3,8,128], index: 2, kind: input, shape index: {}]
  %s3 = inlined_call_operand.hbm [shape: f32[3,8,128], index: 3, kind: input, shape index: {}]
  %s4 = inlined_call_operand.hbm [shape: f32[128,128], index: 4, kind: input, shape index: {}]
  %s5 = inlined_call_operand.hbm [shape: f32[3,8,128], index: 5, kind: output, shape index: {0}]
  %s6 = inlined_call_operand.hbm [shape: f32[3,8,128], index: 6, kind: output, shape index: {1}]
  %s7 = inlined_call_operand.hbm [shape: f32[3,8,128], index: 7, kind: output, shape index: {2}]
  %s8 = inlined_call_operand.hbm [shape: f32[3,8,128], index: 8, kind: output, shape index: {3}]
  %9 = xla_tuple %s5, %s6, %s7, %s8
  %s10 = sld [smem:[#allocation0]]
  $region74: #{tpu_custom_call.1} parent=0
    _
  %s12 = ssub.s32 1, %s10
  %s13 = scalar_select 0, %s12, %s10
  $region1: #{tpu_custom_call.1} parent=0
    #allocation2 [shape = 'u8[4096]{0}', space=vmem, size = 0x1000, scoped, tag = 'input window, operand 0, single buffered']
    #allocation3 [shape = 's32[1]{0}', space=sflag, size = 0x4, scoped, tag = 'scoped memory for tpu_custom_call.1']
    #allocation4 [shape = 's32[1]{0}', space=sflag, size = 0x4, scoped, tag = 'scoped memory for tpu_custom_call.1']
    #allocation5 [shape = 'u8[12288]{0}', space=vmem, size = 0x3000, scoped, tag = 'input window, operand 1, single buffered']
    #allocation6 [shape = 's32[1]{0}', space=sflag, size = 0x4, scoped, tag = 'scoped memory for tpu_custom_call.1']
    #allocation7 [shape = 'u8[12288]{0}', space=vmem, size = 0x3000, scoped, tag = 'input window, operand 2, single buffered']
    #allocation8 [shape = 'u8[12288]{0}', space=vmem, size = 0x3000, scoped, tag = 'input window, operand 3, single buffered']
    #allocation9 [shape = 's32[1]{0}', space=sflag, size = 0x4, scoped, tag = 'scoped memory for tpu_custom_call.1']
    #allocation10 [shape = 'u8[65536]{0}', space=vmem, size = 0x10000, scoped, tag = 'input window, operand 4, single buffered']
    #allocation11 [shape = 'u8[12288]{0}', space=vmem, size = 0x3000, scoped, tag = 'output window, operand 0, single buffered']
    #allocation12 [shape = 'u8[12288]{0}', space=vmem, size = 0x3000, scoped, tag = 'output window, operand 1, single buffered']
    #allocation13 [shape = 's32[1]{0}', space=sflag, size = 0x4, scoped, tag = 'scoped memory for tpu_custom_call.1']
    #allocation14 [shape = 'u8[12288]{0}', space=vmem, size = 0x3000, scoped, tag = 'output window, operand 2, single buffered']
    #allocation15 [shape = 'u8[12288]{0}', space=vmem, size = 0x3000, scoped, tag = 'output window, operand 3, single buffered']
    #allocation16 [shape = 's32[1]{0}', space=sflag, size = 0x4, scoped, tag = 'scoped memory for tpu_custom_call.1']
    %14 = vsyncpa [#allocation3], 0
    %15 = vsyncpa [#allocation6], 0
    %16 = vsyncpa [#allocation9], 0
    %17 = vsyncpa [#allocation4], 0
    %18 = vsyncpa [#allocation13], 0
    %19 = vsyncpa [#allocation16], 0
    // Predicated region
    $region2: #{tpu_custom_call.1} parent=1 // pred_check
      _
    $region3: #{tpu_custom_call.1} parent=1 // pred_check_branch
      %21 = sbr.rel (0) target = $region5
    $region4: #{tpu_custom_call.1} parent=1 // pred_region
      %s23 = ssub.s32 128, 128
      %24 = vsyncadd [#allocation3], %s23
      %s26 = sshll.u32 [#allocation2], 4
      %s27 = int_to_ptr.vmem [resolvable:$true] %s26
      %29 = dma.hbm_to_vmem [thread:$0]  %s0, 128, %s27, [#allocation3]
    $region5: #{tpu_custom_call.1} parent=1 // pred_fallthru
      _
    // Predicated region
    $region6: #{tpu_custom_call.1} parent=1 // pred_check
      _
    $region7: #{tpu_custom_call.1} parent=1 // pred_check_branch
      %31 = sbr.rel (0) target = $region9
    $region8: #{tpu_custom_call.1} parent=1 // pred_region
      %s33 = ssub.s32 384, 384
      %34 = vsyncadd [#allocation6], %s33
      %s35 = sshll.u32 [#allocation5], 4
      %s36 = int_to_ptr.vmem [resolvable:$true] %s35
      %41 = dma.hbm_to_vmem [thread:$0]  %s1, 384, %s36, [#allocation6], 128, 128, 8
    $region9: #{tpu_custom_call.1} parent=1 // pred_fallthru
      _
    // Predicated region
    $region10: #{tpu_custom_call.1} parent=1 // pred_check
      _
    $region11: #{tpu_custom_call.1} parent=1 // pred_check_branch
      %43 = sbr.rel (0) target = $region13
    $region12: #{tpu_custom_call.1} parent=1 // pred_region
      %s45 = ssub.s32 384, 384
      %46 = vsyncadd [#allocation6], %s45
      %s47 = sshll.u32 [#allocation7], 4
      %s48 = int_to_ptr.vmem [resolvable:$true] %s47
      %53 = dma.hbm_to_vmem [thread:$0]  %s2, 384, %s48, [#allocation6], 128, 128, 8
    $region13: #{tpu_custom_call.1} parent=1 // pred_fallthru
      _
    // Predicated region
    $region14: #{tpu_custom_call.1} parent=1 // pred_check
      _
    $region15: #{tpu_custom_call.1} parent=1 // pred_check_branch
      %55 = sbr.rel (0) target = $region17
    $region16: #{tpu_custom_call.1} parent=1 // pred_region
      %s57 = ssub.s32 384, 384
      %58 = vsyncadd [#allocation9], %s57
      %s59 = sshll.u32 [#allocation8], 4
      %s60 = int_to_ptr.vmem [resolvable:$true] %s59
      %65 = dma.hbm_to_vmem [thread:$0]  %s3, 384, %s60, [#allocation9], 128, 128, 8
    $region17: #{tpu_custom_call.1} parent=1 // pred_fallthru
      _
    // Predicated region
    $region18: #{tpu_custom_call.1} parent=1 // pred_check
      _
    $region19: #{tpu_custom_call.1} parent=1 // pred_check_branch
      %67 = sbr.rel (0) target = $region21
    $region20: #{tpu_custom_call.1} parent=1 // pred_region
      %s69 = ssub.s32 2048, 2048
      %70 = vsyncadd [#allocation9], %s69
      %s71 = sshll.u32 [#allocation10], 4
      %s72 = int_to_ptr.vmem [resolvable:$true] %s71
      %77 = dma.hbm_to_vmem [thread:$0]  %s4, 2048, %s72, [#allocation9], 128, 128, 8
    $region21: #{tpu_custom_call.1} parent=1 // pred_fallthru
      _
    // Predicated region
    $region22: #{tpu_custom_call.1} parent=1 // pred_check
      _
    $region23: #{tpu_custom_call.1} parent=1 // pred_check_branch
      %79 = sbr.rel (0) target = $region25
    $region24: #{tpu_custom_call.1} parent=1 // pred_region
      %80 = dma.done [#allocation3], 128
    $region25: #{tpu_custom_call.1} parent=1 // pred_fallthru
      _
    // Predicated region
    $region26: #{tpu_custom_call.1} parent=1 // pred_check
      _
    $region27: #{tpu_custom_call.1} parent=1 // pred_check_branch
      %82 = sbr.rel (0) target = $region29
    $region28: #{tpu_custom_call.1} parent=1 // pred_region
      %83 = dma.done [#allocation6], 384
    $region29: #{tpu_custom_call.1} parent=1 // pred_fallthru
      _
    // Predicated region
    $region30: #{tpu_custom_call.1} parent=1 // pred_check
      _
    $region31: #{tpu_custom_call.1} parent=1 // pred_check_branch
      %85 = sbr.rel (0) target = $region33
    $region32: #{tpu_custom_call.1} parent=1 // pred_region
      %86 = dma.done [#allocation6], 384
    $region33: #{tpu_custom_call.1} parent=1 // pred_fallthru
      _
    // Predicated region
    $region34: #{tpu_custom_call.1} parent=1 // pred_check
      _
    $region35: #{tpu_custom_call.1} parent=1 // pred_check_branch
      %88 = sbr.rel (0) target = $region37
    $region36: #{tpu_custom_call.1} parent=1 // pred_region
      %89 = dma.done [#allocation9], 384
    $region37: #{tpu_custom_call.1} parent=1 // pred_fallthru
      _
    // Predicated region
    $region38: #{tpu_custom_call.1} parent=1 // pred_check
      _
    $region39: #{tpu_custom_call.1} parent=1 // pred_check_branch
      %91 = sbr.rel (0) target = $region41
    $region40: #{tpu_custom_call.1} parent=1 // pred_region
      %92 = dma.done [#allocation9], 2048
    $region41: #{tpu_custom_call.1} parent=1 // pred_fallthru
      _
    %v93 = vld [vmem:[#allocation10] sm:$0xff]
    %v94 = vld [vmem:[#allocation10 + $0x8] sm:$0xff]
    %v95 = vld [vmem:[#allocation10 + $0x10] sm:$0xff]
    %v96 = vld [vmem:[#allocation10 + $0x18] sm:$0xff]
    %v97 = vld [vmem:[#allocation10 + $0x20] sm:$0xff]
    %v98 = vld [vmem:[#allocation10 + $0x28] sm:$0xff]
    %v99 = vld [vmem:[#allocation10 + $0x30] sm:$0xff]
    %v100 = vld [vmem:[#allocation10 + $0x38] sm:$0xff]
    %v101 = vld [vmem:[#allocation10 + $0x40] sm:$0xff]
    %v102 = vld [vmem:[#allocation10 + $0x48] sm:$0xff]
    %v103 = vld [vmem:[#allocation10 + $0x50] sm:$0xff]
    %v104 = vld [vmem:[#allocation10 + $0x58] sm:$0xff]
    %v105 = vld [vmem:[#allocation10 + $0x60] sm:$0xff]
    %v106 = vld [vmem:[#allocation10 + $0x68] sm:$0xff]
    %v107 = vld [vmem:[#allocation10 + $0x70] sm:$0xff]
    %v108 = vld [vmem:[#allocation10 + $0x78] sm:$0xff]
    %v109 = vld [vmem:[#allocation2] sm:$0xff]
    %v110 = vld [vmem:[#allocation5] sm:$0xff]
    %s111 = scalar_lea.vmem [#allocation5], 8
    %v112 = vld [vmem:[%s111] sm:$0xff]
    %s113 = scalar_lea.vmem [#allocation5], 16
    %v114 = vld [vmem:[%s113] sm:$0xff]
    %116 = vset.pattern.permute.xlu0 0
    %117 = vperm.xlu0 %116, %v109
    %v118 = vpop.permute.xlu0 %117
    %v120 = vmul.f32 %v118, %v110
    %121 = vset.pattern.permute.xlu0 1
    %122 = vperm.xlu0 %121, %v109
    %v123 = vpop.permute.xlu0 %122
    %v125 = vmul.f32 %v123, %v112
    %v126 = vadd.f32 %v120, %v125
    %127 = vset.pattern.permute.xlu0 2
    %128 = vperm.xlu0 %127, %v109
    %v129 = vpop.permute.xlu0 %128
    %v131 = vmul.f32 %v129, %v114
    %v132 = vadd.f32 %v126, %v131
    %133 = vset.pattern.permute.xlu0 9
    %134 = vperm.xlu0 %133, %v109
    %v135 = vpop.permute.xlu0 %134
    %v137 = vadd.f32 %v132, %v135
    %138 = vset.pattern.permute.xlu0 3
    %139 = vperm.xlu0 %138, %v109
    %v140 = vpop.permute.xlu0 %139
    %v142 = vmul.f32 %v140, %v110
    %143 = vset.pattern.permute.xlu0 4
    %144 = vperm.xlu0 %143, %v109
    %v145 = vpop.permute.xlu0 %144
    %v147 = vmul.f32 %v145, %v112
    %v148 = vadd.f32 %v142, %v147
    %149 = vset.pattern.permute.xlu0 5
    %150 = vperm.xlu0 %149, %v109
    %v151 = vpop.permute.xlu0 %150
    %v153 = vmul.f32 %v151, %v114
    %v154 = vadd.f32 %v148, %v153
    %155 = vset.pattern.permute.xlu0 10
    %156 = vperm.xlu0 %155, %v109
    %v157 = vpop.permute.xlu0 %156
    %v159 = vadd.f32 %v154, %v157
    %160 = vset.pattern.permute.xlu0 6
    %161 = vperm.xlu0 %160, %v109
    %v162 = vpop.permute.xlu0 %161
    %v164 = vmul.f32 %v162, %v110
    %165 = vset.pattern.permute.xlu0 7
    %166 = vperm.xlu0 %165, %v109
    %v167 = vpop.permute.xlu0 %166
    %v169 = vmul.f32 %v167, %v112
    %v170 = vadd.f32 %v164, %v169
    %171 = vset.pattern.permute.xlu0 8
    %172 = vperm.xlu0 %171, %v109
    %v173 = vpop.permute.xlu0 %172
    %v175 = vmul.f32 %v173, %v114
    %v176 = vadd.f32 %v170, %v175
    %177 = vset.pattern.permute.xlu0 11
    %178 = vperm.xlu0 %177, %v109
    %v179 = vpop.permute.xlu0 %178
    %v181 = vadd.f32 %v176, %v179
    %182 = vst [vmem:[#allocation11] sm:$0xff] %v137
    %s183 = scalar_lea.vmem [#allocation11], 8
    %184 = vst [vmem:[%s183] sm:$0xff] %v159
    %s185 = scalar_lea.vmem [#allocation11], 16
    %186 = vst [vmem:[%s185] sm:$0xff] %v181
    %v187 = vld [vmem:[#allocation7] sm:$0xff]
    %s188 = scalar_lea.vmem [#allocation7], 8
    %v189 = vld [vmem:[%s188] sm:$0xff]
    %s190 = scalar_lea.vmem [#allocation7], 16
    %v191 = vld [vmem:[%s190] sm:$0xff]
    %v192 = vmul.f32 %v118, %v187
    %v193 = vmul.f32 %v123, %v189
    %v194 = vadd.f32 %v192, %v193
    %v195 = vmul.f32 %v129, %v191
    %v196 = vadd.f32 %v194, %v195
    %v197 = vadd.f32 %v196, %v135
    %v198 = vmul.f32 %v140, %v187
    %v199 = vmul.f32 %v145, %v189
    %v200 = vadd.f32 %v198, %v199
    %v201 = vmul.f32 %v151, %v191
    %v202 = vadd.f32 %v200, %v201
    %v203 = vadd.f32 %v202, %v157
    %v204 = vmul.f32 %v162, %v187
    %v205 = vmul.f32 %v167, %v189
    %v206 = vadd.f32 %v204, %v205
    %v207 = vmul.f32 %v173, %v191
    %v208 = vadd.f32 %v206, %v207
    %v209 = vadd.f32 %v208, %v179
    %210 = vst [vmem:[#allocation12] sm:$0xff] %v197
    %s211 = scalar_lea.vmem [#allocation12], 8
    %212 = vst [vmem:[%s211] sm:$0xff] %v203
    %s213 = scalar_lea.vmem [#allocation12], 16
    %214 = vst [vmem:[%s213] sm:$0xff] %v209
    %v215 = vld [vmem:[#allocation8] sm:$0xff]
    %s216 = scalar_lea.vmem [#allocation8], 8
    %v217 = vld [vmem:[%s216] sm:$0xff]
    %s218 = scalar_lea.vmem [#allocation8], 16
    %v219 = vld [vmem:[%s218] sm:$0xff]
    %220 = vset.pattern.permute.xlu0 12
    %221 = vperm.xlu0 %220, %v109
    %v222 = vpop.permute.xlu0 %221
    %v224 = vmul.f32 %v222, %v215
    %225 = vset.pattern.permute.xlu0 13
    %226 = vperm.xlu0 %225, %v109
    %v227 = vpop.permute.xlu0 %226
    %v229 = vmul.f32 %v227, %v217
    %v230 = vadd.f32 %v224, %v229
    %231 = vset.pattern.permute.xlu0 14
    %232 = vperm.xlu0 %231, %v109
    %v233 = vpop.permute.xlu0 %232
    %v235 = vmul.f32 %v233, %v219
    %v236 = vadd.f32 %v230, %v235
    %237 = vset.pattern.permute.xlu0 21
    %238 = vperm.xlu0 %237, %v109
    %v239 = vpop.permute.xlu0 %238
    %v241 = vadd.f32 %v236, %v239
    %242 = vset.pattern.permute.xlu0 15
    %243 = vperm.xlu0 %242, %v109
    %v244 = vpop.permute.xlu0 %243
    %v246 = vmul.f32 %v244, %v215
    %247 = vset.pattern.permute.xlu0 16
    %248 = vperm.xlu0 %247, %v109
    %v249 = vpop.permute.xlu0 %248
    %v251 = vmul.f32 %v249, %v217
    %v252 = vadd.f32 %v246, %v251
    %253 = vset.pattern.permute.xlu0 17
    %254 = vperm.xlu0 %253, %v109
    %v255 = vpop.permute.xlu0 %254
    %v257 = vmul.f32 %v255, %v219
    %v258 = vadd.f32 %v252, %v257
    %259 = vset.pattern.permute.xlu0 22
    %260 = vperm.xlu0 %259, %v109
    %v261 = vpop.permute.xlu0 %260
    %v263 = vadd.f32 %v258, %v261
    %264 = vset.pattern.permute.xlu0 18
    %265 = vperm.xlu0 %264, %v109
    %v266 = vpop.permute.xlu0 %265
    %v268 = vmul.f32 %v266, %v215
    %269 = vset.pattern.permute.xlu0 19
    %270 = vperm.xlu0 %269, %v109
    %v271 = vpop.permute.xlu0 %270
    %v273 = vmul.f32 %v271, %v217
    %v274 = vadd.f32 %v268, %v273
    %275 = vset.pattern.permute.xlu0 20
    %276 = vperm.xlu0 %275, %v109
    %v277 = vpop.permute.xlu0 %276
    %v279 = vmul.f32 %v277, %v219
    %v280 = vadd.f32 %v274, %v279
    %281 = vset.pattern.permute.xlu0 23
    %282 = vperm.xlu0 %281, %v109
    %v283 = vpop.permute.xlu0 %282
    %v285 = vadd.f32 %v280, %v283
    %286 = vst [vmem:[#allocation15] sm:$0xff] %v241
    %s287 = scalar_lea.vmem [#allocation15], 8
    %288 = vst [vmem:[%s287] sm:$0xff] %v263
    %s289 = scalar_lea.vmem [#allocation15], 16
    %290 = vst [vmem:[%s289] sm:$0xff] %v285
    %291 = vmatprep.subr.mxu0 0.0
    %292 = vmatpush1.msra.mxu0 %v93
    %293 = vmatprep.subr.mxu0 0.0
    %294 = vmatpush1.msra.mxu0 %v94
    %295 = vmatprep.subr.mxu0 0.0
    %296 = vmatpush1.msra.mxu0 %v95
    %297 = vmatprep.subr.mxu0 0.0
    %298 = vmatpush1.msra.mxu0 %v96
    %299 = vmatprep.subr.mxu0 0.0
    %300 = vmatpush1.msra.mxu0 %v97
    %301 = vmatprep.subr.mxu0 0.0
    %302 = vmatpush1.msra.mxu0 %v98
    %303 = vmatprep.subr.mxu0 0.0
    %304 = vmatpush1.msra.mxu0 %v99
    %305 = vmatprep.subr.mxu0 0.0
    %306 = vmatpush1.msra.mxu0 %v100
    %307 = vmatprep.subr.mxu0 0.0
    %308 = vmatpush1.msra.mxu0 %v101
    %309 = vmatprep.subr.mxu0 0.0
    %310 = vmatpush1.msra.mxu0 %v102
    %311 = vmatprep.subr.mxu0 0.0
    %312 = vmatpush1.msra.mxu0 %v103
    %313 = vmatprep.subr.mxu0 0.0
    %314 = vmatpush1.msra.mxu0 %v104
    %315 = vmatprep.subr.mxu0 0.0
    %316 = vmatpush1.msra.mxu0 %v105
    %317 = vmatprep.subr.mxu0 0.0
    %318 = vmatpush1.msra.mxu0 %v106
    %319 = vmatprep.subr.mxu0 0.0
    %320 = vmatpush1.msra.mxu0 %v107
    %321 = vmatprep.subr.mxu0 0.0
    %322 = vmatpush1.msra.mxu0 %v108
    %323 = vmatprep.subr.mxu0 0.0
    %324 = vmatpush1.msra.mxu0 0.0
    %325 = vmatprep.subr.mxu0 0.0
    %326 = vmatpush1.msra.mxu0 0.0
    %327 = vmatprep.subr.mxu0 0.0
    %328 = vmatpush1.msra.mxu0 0.0
    %329 = vmatprep.subr.mxu0 0.0
    %330 = vmatpush1.msra.mxu0 0.0
    %331 = vmatprep.subr.mxu0 0.0
    %332 = vmatpush1.msra.mxu0 0.0
    %333 = vmatprep.subr.mxu0 0.0
    %334 = vmatpush1.msra.mxu0 0.0
    %335 = vmatprep.subr.mxu0 0.0
    %336 = vmatpush1.msra.mxu0 0.0
    %337 = vmatprep.subr.mxu0 0.0
    %338 = vmatpush1.msra.mxu0 0.0
    %339 = vmatprep.subr.mxu0 0.0
    %340 = vmatpush1.msra.mxu0 0.0
    %341 = vmatprep.subr.mxu0 0.0
    %342 = vmatpush1.msra.mxu0 0.0
    %343 = vmatprep.subr.mxu0 0.0
    %344 = vmatpush1.msra.mxu0 0.0
    %345 = vmatprep.subr.mxu0 0.0
    %346 = vmatpush1.msra.mxu0 0.0
    %347 = vmatprep.subr.mxu0 0.0
    %348 = vmatpush1.msra.mxu0 0.0
    %349 = vmatprep.subr.mxu0 0.0
    %350 = vmatpush1.msra.mxu0 0.0
    %351 = vmatprep.subr.mxu0 0.0
    %352 = vmatpush1.msra.mxu0 0.0
    %353 = vmatprep.subr.mxu0 0.0
    %354 = vmatpush1.msra.mxu0 0.0
    %355 = vmatprep.mubr.f32.mxu0 0.0
    %356 = vmatmul.mubr.f32.gmra.mrb[0].mxu0 %v137
    %v357 = vpop.f32.mrb[0].mxu0
    %v358 = vadd.f32 0.0, %v357
    %v359 = vpop.f32.mrb[0].mxu0
    %360 = vdwg.mxu0
    %361 = vst [vmem:[#allocation14] sm:$0xff] %v358
    %362 = vmatprep.subr.mxu0 0.0
    %363 = vmatpush1.msra.mxu0 %v93
    %364 = vmatprep.subr.mxu0 0.0
    %365 = vmatpush1.msra.mxu0 %v94
    %366 = vmatprep.subr.mxu0 0.0
    %367 = vmatpush1.msra.mxu0 %v95
    %368 = vmatprep.subr.mxu0 0.0
    %369 = vmatpush1.msra.mxu0 %v96
    %370 = vmatprep.subr.mxu0 0.0
    %371 = vmatpush1.msra.mxu0 %v97
    %372 = vmatprep.subr.mxu0 0.0
    %373 = vmatpush1.msra.mxu0 %v98
    %374 = vmatprep.subr.mxu0 0.0
    %375 = vmatpush1.msra.mxu0 %v99
    %376 = vmatprep.subr.mxu0 0.0
    %377 = vmatpush1.msra.mxu0 %v100
    %378 = vmatprep.subr.mxu0 0.0
    %379 = vmatpush1.msra.mxu0 %v101
    %380 = vmatprep.subr.mxu0 0.0
    %381 = vmatpush1.msra.mxu0 %v102
    %382 = vmatprep.subr.mxu0 0.0
    %383 = vmatpush1.msra.mxu0 %v103
    %384 = vmatprep.subr.mxu0 0.0
    %385 = vmatpush1.msra.mxu0 %v104
    %386 = vmatprep.subr.mxu0 0.0
    %387 = vmatpush1.msra.mxu0 %v105
    %388 = vmatprep.subr.mxu0 0.0
    %389 = vmatpush1.msra.mxu0 %v106
    %390 = vmatprep.subr.mxu0 0.0
    %391 = vmatpush1.msra.mxu0 %v107
    %392 = vmatprep.subr.mxu0 0.0
    %393 = vmatpush1.msra.mxu0 %v108
    %394 = vmatprep.subr.mxu0 0.0
    %395 = vmatpush1.msra.mxu0 0.0
    %396 = vmatprep.subr.mxu0 0.0
    %397 = vmatpush1.msra.mxu0 0.0
    %398 = vmatprep.subr.mxu0 0.0
    %399 = vmatpush1.msra.mxu0 0.0
    %400 = vmatprep.subr.mxu0 0.0
    %401 = vmatpush1.msra.mxu0 0.0
    %402 = vmatprep.subr.mxu0 0.0
    %403 = vmatpush1.msra.mxu0 0.0
    %404 = vmatprep.subr.mxu0 0.0
    %405 = vmatpush1.msra.mxu0 0.0
    %406 = vmatprep.subr.mxu0 0.0
    %407 = vmatpush1.msra.mxu0 0.0
    %408 = vmatprep.subr.mxu0 0.0
    %409 = vmatpush1.msra.mxu0 0.0
    %410 = vmatprep.subr.mxu0 0.0
    %411 = vmatpush1.msra.mxu0 0.0
    %412 = vmatprep.subr.mxu0 0.0
    %413 = vmatpush1.msra.mxu0 0.0
    %414 = vmatprep.subr.mxu0 0.0
    %415 = vmatpush1.msra.mxu0 0.0
    %416 = vmatprep.subr.mxu0 0.0
    %417 = vmatpush1.msra.mxu0 0.0
    %418 = vmatprep.subr.mxu0 0.0
    %419 = vmatpush1.msra.mxu0 0.0
    %420 = vmatprep.subr.mxu0 0.0
    %421 = vmatpush1.msra.mxu0 0.0
    %422 = vmatprep.subr.mxu0 0.0
    %423 = vmatpush1.msra.mxu0 0.0
    %424 = vmatprep.subr.mxu0 0.0
    %425 = vmatpush1.msra.mxu0 0.0
    %426 = vmatprep.mubr.f32.mxu0 0.0
    %427 = vmatmul.mubr.f32.gmra.mrb[0].mxu0 %v159
    %v428 = vpop.f32.mrb[0].mxu0
    %v429 = vadd.f32 0.0, %v428
    %v430 = vpop.f32.mrb[0].mxu0
    %431 = vdwg.mxu0
    %s432 = scalar_lea.vmem [#allocation14], 8
    %433 = vst [vmem:[%s432] sm:$0xff] %v429
    %434 = vmatprep.subr.mxu0 0.0
    %435 = vmatpush1.msra.mxu0 %v93
    %436 = vmatprep.subr.mxu0 0.0
    %437 = vmatpush1.msra.mxu0 %v94
    %438 = vmatprep.subr.mxu0 0.0
    %439 = vmatpush1.msra.mxu0 %v95
    %440 = vmatprep.subr.mxu0 0.0
    %441 = vmatpush1.msra.mxu0 %v96
    %442 = vmatprep.subr.mxu0 0.0
    %443 = vmatpush1.msra.mxu0 %v97
    %444 = vmatprep.subr.mxu0 0.0
    %445 = vmatpush1.msra.mxu0 %v98
    %446 = vmatprep.subr.mxu0 0.0
    %447 = vmatpush1.msra.mxu0 %v99
    %448 = vmatprep.subr.mxu0 0.0
    %449 = vmatpush1.msra.mxu0 %v100
    %450 = vmatprep.subr.mxu0 0.0
    %451 = vmatpush1.msra.mxu0 %v101
    %452 = vmatprep.subr.mxu0 0.0
    %453 = vmatpush1.msra.mxu0 %v102
    %454 = vmatprep.subr.mxu0 0.0
    %455 = vmatpush1.msra.mxu0 %v103
    %456 = vmatprep.subr.mxu0 0.0
    %457 = vmatpush1.msra.mxu0 %v104
    %458 = vmatprep.subr.mxu0 0.0
    %459 = vmatpush1.msra.mxu0 %v105
    %460 = vmatprep.subr.mxu0 0.0
    %461 = vmatpush1.msra.mxu0 %v106
    %462 = vmatprep.subr.mxu0 0.0
    %463 = vmatpush1.msra.mxu0 %v107
    %464 = vmatprep.subr.mxu0 0.0
    %465 = vmatpush1.msra.mxu0 %v108
    %466 = vmatprep.subr.mxu0 0.0
    %467 = vmatpush1.msra.mxu0 0.0
    %468 = vmatprep.subr.mxu0 0.0
    %469 = vmatpush1.msra.mxu0 0.0
    %470 = vmatprep.subr.mxu0 0.0
    %471 = vmatpush1.msra.mxu0 0.0
    %472 = vmatprep.subr.mxu0 0.0
    %473 = vmatpush1.msra.mxu0 0.0
    %474 = vmatprep.subr.mxu0 0.0
    %475 = vmatpush1.msra.mxu0 0.0
    %476 = vmatprep.subr.mxu0 0.0
    %477 = vmatpush1.msra.mxu0 0.0
    %478 = vmatprep.subr.mxu0 0.0
    %479 = vmatpush1.msra.mxu0 0.0
    %480 = vmatprep.subr.mxu0 0.0
    %481 = vmatpush1.msra.mxu0 0.0
    %482 = vmatprep.subr.mxu0 0.0
    %483 = vmatpush1.msra.mxu0 0.0
    %484 = vmatprep.subr.mxu0 0.0
    %485 = vmatpush1.msra.mxu0 0.0
    %486 = vmatprep.subr.mxu0 0.0
    %487 = vmatpush1.msra.mxu0 0.0
    %488 = vmatprep.subr.mxu0 0.0
    %489 = vmatpush1.msra.mxu0 0.0
    %490 = vmatprep.subr.mxu0 0.0
    %491 = vmatpush1.msra.mxu0 0.0
    %492 = vmatprep.subr.mxu0 0.0
    %493 = vmatpush1.msra.mxu0 0.0
    %494 = vmatprep.subr.mxu0 0.0
    %495 = vmatpush1.msra.mxu0 0.0
    %496 = vmatprep.subr.mxu0 0.0
    %497 = vmatpush1.msra.mxu0 0.0
    %498 = vmatprep.mubr.f32.mxu0 0.0
    %499 = vmatmul.mubr.f32.gmra.mrb[0].mxu0 %v181
    %v500 = vpop.f32.mrb[0].mxu0
    %v501 = vadd.f32 0.0, %v500
    %v502 = vpop.f32.mrb[0].mxu0
    %503 = vdwg.mxu0
    %s504 = scalar_lea.vmem [#allocation14], 16
    %505 = vst [vmem:[%s504] sm:$0xff] %v501
    // Predicated region
    $region42: #{tpu_custom_call.1} parent=1 // pred_check
      _
    $region43: #{tpu_custom_call.1} parent=1 // pred_check_branch
      %507 = sbr.rel (0) target = $region45
    $region44: #{tpu_custom_call.1} parent=1 // pred_region
      %s509 = ssub.s32 384, 384
      %510 = vsyncadd [#allocation4], %s509
      %s511 = sshll.u32 [#allocation11], 4
      %s512 = int_to_ptr.vmem [resolvable:$true] %s511
      %517 = dma.vmem_to_hbm [thread:$0]  %s512, 384, %s5, [#allocation4], 128, 128, 8
    $region45: #{tpu_custom_call.1} parent=1 // pred_fallthru
      _
    // Predicated region
    $region46: #{tpu_custom_call.1} parent=1 // pred_check
      _
    $region47: #{tpu_custom_call.1} parent=1 // pred_check_branch
      %519 = sbr.rel (0) target = $region49
    $region48: #{tpu_custom_call.1} parent=1 // pred_region
      %s521 = ssub.s32 384, 384
      %522 = vsyncadd [#allocation13], %s521
      %s523 = sshll.u32 [#allocation12], 4
      %s524 = int_to_ptr.vmem [resolvable:$true] %s523
      %529 = dma.vmem_to_hbm [thread:$0]  %s524, 384, %s6, [#allocation13], 128, 128, 8
    $region49: #{tpu_custom_call.1} parent=1 // pred_fallthru
      _
    // Predicated region
    $region50: #{tpu_custom_call.1} parent=1 // pred_check
      _
    $region51: #{tpu_custom_call.1} parent=1 // pred_check_branch
      %531 = sbr.rel (0) target = $region53
    $region52: #{tpu_custom_call.1} parent=1 // pred_region
      %s533 = ssub.s32 384, 384
      %534 = vsyncadd [#allocation13], %s533
      %s535 = sshll.u32 [#allocation14], 4
      %s536 = int_to_ptr.vmem [resolvable:$true] %s535
      %541 = dma.vmem_to_hbm [thread:$0]  %s536, 384, %s7, [#allocation13], 128, 128, 8
    $region53: #{tpu_custom_call.1} parent=1 // pred_fallthru
      _
    // Predicated region
    $region54: #{tpu_custom_call.1} parent=1 // pred_check
      _
    $region55: #{tpu_custom_call.1} parent=1 // pred_check_branch
      %543 = sbr.rel (0) target = $region57
    $region56: #{tpu_custom_call.1} parent=1 // pred_region
      %s545 = ssub.s32 384, 384
      %546 = vsyncadd [#allocation16], %s545
      %s547 = sshll.u32 [#allocation15], 4
      %s548 = int_to_ptr.vmem [resolvable:$true] %s547
      %553 = dma.vmem_to_hbm [thread:$0]  %s548, 384, %s8, [#allocation16], 128, 128, 8
    $region57: #{tpu_custom_call.1} parent=1 // pred_fallthru
      _
    // Predicated region
    $region58: #{tpu_custom_call.1} parent=1 // pred_check
      _
    $region59: #{tpu_custom_call.1} parent=1 // pred_check_branch
      %555 = sbr.rel (0) target = $region61
    $region60: #{tpu_custom_call.1} parent=1 // pred_region
      %556 = dma.done [#allocation4], 384
    $region61: #{tpu_custom_call.1} parent=1 // pred_fallthru
      _
    // Predicated region
    $region62: #{tpu_custom_call.1} parent=1 // pred_check
      _
    $region63: #{tpu_custom_call.1} parent=1 // pred_check_branch
      %558 = sbr.rel (0) target = $region65
    $region64: #{tpu_custom_call.1} parent=1 // pred_region
      %559 = dma.done [#allocation13], 384
    $region65: #{tpu_custom_call.1} parent=1 // pred_fallthru
      _
    // Predicated region
    $region66: #{tpu_custom_call.1} parent=1 // pred_check
      _
    $region67: #{tpu_custom_call.1} parent=1 // pred_check_branch
      %561 = sbr.rel (0) target = $region69
    $region68: #{tpu_custom_call.1} parent=1 // pred_region
      %562 = dma.done [#allocation13], 384
    $region69: #{tpu_custom_call.1} parent=1 // pred_fallthru
      _
    // Predicated region
    $region70: #{tpu_custom_call.1} parent=1 // pred_check
      _
    $region71: #{tpu_custom_call.1} parent=1 // pred_check_branch
      %564 = sbr.rel (0) target = $region73
    $region72: #{tpu_custom_call.1} parent=1 // pred_region
      %565 = dma.done [#allocation16], 384
    $region73: #{tpu_custom_call.1} parent=1 // pred_fallthru
      _
    %566 = vsyncpa [#allocation3], 1
    %567 = vsyncpa [#allocation6], 1
    %568 = vsyncpa [#allocation9], 1
    %569 = vsyncpa [#allocation4], 1
    %570 = vsyncpa [#allocation13], 1
    %571 = vsyncpa [#allocation16], 1

</llo_original>
